<compile_context>
chip_gen: v6e
topology: v6e:2x2x1
jax: 0.10.0
libtpu: 0.0.40
codegen_flags: <defaults>
</compile_context>

<pallas_src>
import functools

import jax
import jax.numpy as jnp
from jax.experimental import pallas as pl
from jax.experimental.pallas import tpu as pltpu


def _nll_block_kernel(x_ref, t_ref, o_ref, *, scale_factor, total_n, tile_n):
    i = pl.program_id(0)

    xf = x_ref[...].astype(jnp.float32)                 # (tile_n, C), f32 math
    tn, c = xf.shape

    # Row max of the *scaled* logits computed from the raw block: scale only the
    # reduced (tile_n, 1) scalar.  scale_factor is a static Python float, so the
    # sign handling is a trace-time branch.
    if scale_factor >= 0.0:
        m = scale_factor * jnp.max(xf, axis=-1, keepdims=True)
    else:
        m = scale_factor * jnp.min(xf, axis=-1, keepdims=True)

    # Numerically-stable log-sum-exp over the class (lane) axis.
    sum_exp = jnp.sum(jnp.exp(scale_factor * xf - m), axis=-1, keepdims=True)
    lse = m + jnp.log(sum_exp)                           # (tile_n, 1)

    # Target gather: (1, C) lane iota; the compare broadcasts against the
    # (tile_n, 1) targets, avoiding a full (tile_n, C) iota temporary.
    cols = jax.lax.broadcasted_iota(jnp.int32, (1, c), 1)
    logit_t = scale_factor * jnp.sum(
        jnp.where(cols == t_ref[...], xf, 0.0), axis=-1, keepdims=True)

    nll = lse - logit_t                                  # (tile_n, 1)

    # Mask rows of the (possibly ragged) last block; padded rows may hold stale
    # VMEM but jnp.where is a select, so NaN/inf cannot leak into the masked 0s.
    rows = i * tile_n + jax.lax.broadcasted_iota(jnp.int32, (tn, 1), 0)
    nll = jnp.where(rows < total_n, nll, 0.0)

    # One lane-dense partial sum per block (all 128 lanes carry the same value).
    o_ref[...] = jnp.broadcast_to(jnp.sum(nll), o_ref.shape).astype(jnp.float32)


def _pick_tile_n(n, c, itemsize):
    """Row tile from a ~6 MiB f32 working budget, >=2 blocks for non-tiny N."""
    pack = max(1, 4 // itemsize)          # rows packed per 32-bit sublane word
    row_mult = 8 * pack                   # 8 (f32) / 16 (bf16) / 32 (int8, fp8)
    if n <= row_mult:
        return n                          # single full-extent block, always legal

    budget_f32 = 6 * 1024 * 1024          # f32 full-block working-set budget
    raw = budget_f32 // max(1, c * 4)
    rows = max(row_mult, (raw // row_mult) * row_mult)

    # Cap so the grid has >= 2 steps: both v7x TensorCores get work via the
    # "parallel" row axis (each TC has its own VMEM, so this costs no budget).
    half_rounded = (((n + 1) // 2 + row_mult - 1) // row_mult) * row_mult
    return max(row_mult, min(rows, half_rounded))


def scaled_softmax_loss(x, target, scale_factor=1.0, tile_n=None):
    """x: (N, C) float (f32/bf16), target: (N,) int. Returns scalar f32 loss."""
    n, c = x.shape
    itemsize = jnp.dtype(x.dtype).itemsize
    if tile_n is None:
        tile_n = _pick_tile_n(n, c, itemsize)
    num_blocks = pl.cdiv(n, tile_n)

    t2d = target.astype(jnp.int32).reshape(n, 1)

    kernel = functools.partial(
        _nll_block_kernel,
        scale_factor=float(scale_factor),
        total_n=n,
        tile_n=tile_n,
    )

    # VMEM budget: double-buffered input block + ~4 full-block f32 intermediates
    # (cast, exp argument/result, select output) + small row tiles + headroom.
    in_block = tile_n * c * itemsize
    f32_block = tile_n * c * 4
    needed = 2 * in_block + 4 * f32_block + 32 * tile_n + (2 << 20)
    vmem_limit = int(min(max(needed, 16 << 20), 48 << 20))   # safe on v7x 64 MiB/TC

    partial = pl.pallas_call(
        kernel,
        out_shape=jax.ShapeDtypeStruct((num_blocks, 1, 128), jnp.float32),
        grid=(num_blocks,),
        in_specs=[
            pl.BlockSpec((tile_n, c), lambda i: (i, 0)),     # logits row tile
            pl.BlockSpec((tile_n, 1), lambda i: (i, 0)),     # target row tile
        ],
        out_specs=pl.BlockSpec((1, 1, 128), lambda i: (i, 0, 0)),
        compiler_params=pltpu.CompilerParams(
            dimension_semantics=("parallel",),               # both TCs on v7x
            vmem_limit_bytes=vmem_limit,
        ),
    )(x, t2d)

    # Padded rows contributed 0, so summing the per-block partials / N is exact.
    return jnp.sum(partial[:, 0, 0]) / jnp.float32(n)


if __name__ == "__main__":
    key = jax.random.PRNGKey(0)
    kx, kt = jax.random.split(key)

    scale_factor = 1.5

    def reference(xv, tv, scale):
        logp = jax.nn.log_softmax(scale * xv.astype(jnp.float32), axis=-1)
        return -jnp.mean(logp[jnp.arange(xv.shape[0]), tv])

    # 1) small f32 case (module's default call)
    N, C = 8, 32
    x = jax.random.normal(kx, (N, C), dtype=jnp.float32)
    target = jax.random.randint(kt, (N,), 0, C, dtype=jnp.int32)
    loss = jax.block_until_ready(scaled_softmax_loss(x, target, scale_factor))
    ref = reference(x, target, scale_factor)
    assert jnp.allclose(loss, ref, rtol=1e-5, atol=1e-5), (loss, ref)

    # 2) bf16 ingest (HBM traffic halved; compute stays f32 inside the kernel)
    x_bf16 = x.astype(jnp.bfloat16)
    loss_bf = jax.block_until_ready(scaled_softmax_loss(x_bf16, target, scale_factor))
    ref_bf = reference(x_bf16, target, scale_factor)
    assert jnp.allclose(loss_bf, ref_bf, rtol=1e-4, atol=1e-4), (loss_bf, ref_bf)

    # 3) multi-block grid with a ragged last block (N not divisible by tile_n)
    N2, C2 = 20, 160
    kx2, kt2 = jax.random.split(jax.random.PRNGKey(0))
    x2 = jax.random.normal(kx2, (N2, C2), dtype=jnp.float32)
    t2 = jax.random.randint(kt2, (N2,), 0, C2, dtype=jnp.int32)
    loss2 = jax.block_until_ready(
        scaled_softmax_loss(x2, t2, scale_factor, tile_n=8))
    ref2 = reference(x2, t2, scale_factor)
    assert jnp.allclose(loss2, ref2, rtol=1e-5, atol=1e-5), (loss2, ref2)

    # 4) auto-tiled multi-block path (>= 2 grid steps, negative scale)
    N3, C3 = 40, 256
    kx3, kt3 = jax.random.split(jax.random.PRNGKey(1))
    x3 = jax.random.normal(kx3, (N3, C3), dtype=jnp.float32)
    t3 = jax.random.randint(kt3, (N3,), 0, C3, dtype=jnp.int32)
    loss3 = jax.block_until_ready(scaled_softmax_loss(x3, t3, -0.75))
    ref3 = reference(x3, t3, -0.75)
    assert jnp.allclose(loss3, ref3, rtol=1e-5, atol=1e-5), (loss3, ref3)

    print("KERNEL_OK")
</pallas_src>

<mosaic_0001>
module attributes {stable_mosaic.version = 11 : i64} {
  func.func @_nll_block_kernel(%arg0: i32, %arg1: memref<8x32xf32, #tpu.memory_space<vmem>>, %arg2: memref<8x1xi32, #tpu.memory_space<vmem>>, %arg3: memref<1x1x128xf32, #tpu.memory_space<vmem>>) attributes {dimension_semantics = [#tpu.dimension_semantics<parallel>], iteration_bounds = array<i64: 1>, scalar_prefetch = 0 : i64, scratch_operands = 0 : i64, tpu.core_type = #tpu.core_type<tc>, window_params = [{transform_indices = @transform_0, window_bounds = array<i64: 8, 32>}, {transform_indices = @transform_1, window_bounds = array<i64: 8, 1>}, {transform_indices = @transform_2, window_bounds = array<i64: 1, 1, 128>}]} {
    %c0 = arith.constant 0 : index
    %c0_0 = arith.constant 0 : index
    %0 = vector.load %arg1[%c0, %c0_0] : memref<8x32xf32, #tpu.memory_space<vmem>>, vector<8x32xf32>
    %cst = arith.constant dense<0xFF800000> : vector<8xf32>
    %1 = vector.multi_reduction <maximumf>, %0, %cst [1] : vector<8x32xf32> to vector<8xf32>
    %2 = vector.shape_cast %1 : vector<8xf32> to vector<8x1xf32>
    %cst_1 = arith.constant 1.500000e+00 : f32
    %3 = vector.broadcast %cst_1 : f32 to vector<8x1xf32>
    %4 = arith.mulf %3, %2 : vector<8x1xf32>
    %cst_2 = arith.constant 1.500000e+00 : f32
    %5 = vector.broadcast %cst_2 : f32 to vector<8x32xf32>
    %6 = arith.mulf %5, %0 : vector<8x32xf32>
    %7 = vector.broadcast %4 : vector<8x1xf32> to vector<8x32xf32>
    %8 = arith.subf %6, %7 : vector<8x32xf32>
    %9 = math.exp %8 : vector<8x32xf32>
    %cst_3 = arith.constant dense<0.000000e+00> : vector<8xf32>
    %10 = vector.multi_reduction <add>, %9, %cst_3 [1] : vector<8x32xf32> to vector<8xf32>
    %11 = vector.shape_cast %10 : vector<8xf32> to vector<8x1xf32>
    %12 = math.log %11 : vector<8x1xf32>
    %13 = arith.addf %4, %12 : vector<8x1xf32>
    %14 = tpu.iota {dimensions = array<i32: 1>} : vector<1x32xi32>
    %c0_4 = arith.constant 0 : index
    %c0_5 = arith.constant 0 : index
    %15 = vector.load %arg2[%c0_4, %c0_5] : memref<8x1xi32, #tpu.memory_space<vmem>>, vector<8x1xi32>
    %16 = vector.broadcast %14 : vector<1x32xi32> to vector<8x32xi32>
    %17 = vector.broadcast %15 : vector<8x1xi32> to vector<8x32xi32>
    %18 = arith.cmpi eq, %16, %17 : vector<8x32xi32>
    %cst_6 = arith.constant 0.000000e+00 : f32
    %19 = vector.broadcast %cst_6 : f32 to vector<8x32xf32>
    %20 = arith.select %18, %0, %19 : vector<8x32xi1>, vector<8x32xf32>
    %cst_7 = arith.constant dense<0.000000e+00> : vector<8xf32>
    %21 = vector.multi_reduction <add>, %20, %cst_7 [1] : vector<8x32xf32> to vector<8xf32>
    %22 = vector.shape_cast %21 : vector<8xf32> to vector<8x1xf32>
    %cst_8 = arith.constant 1.500000e+00 : f32
    %23 = vector.broadcast %cst_8 : f32 to vector<8x1xf32>
    %24 = arith.mulf %23, %22 : vector<8x1xf32>
    %25 = arith.subf %13, %24 : vector<8x1xf32>
    %c8_i32 = arith.constant 8 : i32
    %26 = arith.muli %arg0, %c8_i32 : i32
    %27 = tpu.iota {dimensions = array<i32: 0>} : vector<8x1xi32>
    %28 = vector.broadcast %26 : i32 to vector<8x1xi32>
    %29 = arith.addi %28, %27 : vector<8x1xi32>
    %c8_i32_9 = arith.constant 8 : i32
    %30 = vector.broadcast %c8_i32_9 : i32 to vector<8x1xi32>
    %31 = arith.cmpi slt, %29, %30 : vector<8x1xi32>
    %cst_10 = arith.constant 0.000000e+00 : f32
    %32 = vector.broadcast %cst_10 : f32 to vector<8x1xf32>
    %33 = arith.select %31, %25, %32 : vector<8x1xi1>, vector<8x1xf32>
    %34 = vector.shape_cast %33 : vector<8x1xf32> to vector<1x8x1xf32>
    %cst_11 = arith.constant dense<0.000000e+00> : vector<1xf32>
    %35 = vector.multi_reduction <add>, %34, %cst_11 [1, 2] : vector<1x8x1xf32> to vector<1xf32>
    %36 = vector.shape_cast %35 : vector<1xf32> to vector<1x1x1xf32>
    %37 = vector.extract %36[0, 0, 0] : f32 from vector<1x1x1xf32>
    %38 = vector.broadcast %37 : f32 to vector<1x1x128xf32>
    %c0_12 = arith.constant 0 : index
    %c0_13 = arith.constant 0 : index
    %c0_14 = arith.constant 0 : index
    %39 = vector.load %arg3[%c0_12, %c0_13, %c0_14] : memref<1x1x128xf32, #tpu.memory_space<vmem>>, vector<1x1x128xf32>
    tpu.vector_store %arg3[%c0_12, %c0_13, %c0_14], %38 {strides = array<i32>} : memref<1x1x128xf32, #tpu.memory_space<vmem>>, vector<1x1x128xf32>,
    return
  }
  func.func @transform_0(%arg0: i32) -> (i32, i32) {
    %c0_i32 = arith.constant 0 : i32
    %c0_i32_0 = arith.constant 0 : i32
    return %arg0, %c0_i32 : i32, i32
  }
  func.func @transform_1(%arg0: i32) -> (i32, i32) {
    %c0_i32 = arith.constant 0 : i32
    %c0_i32_0 = arith.constant 0 : i32
    return %arg0, %c0_i32 : i32, i32
  }
  func.func @transform_2(%arg0: i32) -> (i32, i32, i32) {
    %c0_i32 = arith.constant 0 : i32
    %c0_i32_0 = arith.constant 0 : i32
    %c0_i32_1 = arith.constant 0 : i32
    return %arg0, %c0_i32, %c0_i32_0 : i32, i32, i32
  }
}

</mosaic_0001>

<llo_original>
// kernel: tpu_custom_call.1
$region0: #{tpu_custom_call.1}
  #allocation0 [shape = 'u32[]', space=smem, size = 0x4, offset = 0x4, fixed_abs, tag = 'smem constant byte address 0x4 - core index']
  #allocation1 [shape = 'u32[144,128]{1,0:T(1,128)}', space=vmem, size = 0x12000, scoped, tag = 'internal scratch']
  %s0 = inlined_call_operand.vmem [shape: f32[8,32], index: 0, kind: input, shape index: {}]
  %s1 = inlined_call_operand.vmem [shape: s32[8,1], index: 1, kind: input, shape index: {}]
  %s2 = inlined_call_operand.hbm [shape: f32[1,1,128], index: 2, kind: output, shape index: {}]
  %s3 = sld [smem:[#allocation0]]
  $region18: #{tpu_custom_call.1} parent=0
    _
  %s5 = ssub.s32 1, %s3
  %s6 = scalar_select 0, %s5, %s3
  $region1: #{tpu_custom_call.1} parent=0
    #allocation2 [shape = 'u8[512]{0}', space=vmem, size = 0x400, scoped, tag = 'output window, operand 0, single buffered']
    #allocation3 [shape = 's32[1]{0}', space=sflag, size = 0x4, scoped, tag = 'scoped memory for tpu_custom_call.1']
    %7 = vsyncpa [#allocation3], 0
    // Predicated region
    $region2: #{tpu_custom_call.1} parent=1 // pred_check
      _
    $region3: #{tpu_custom_call.1} parent=1 // pred_check_branch
      %9 = sbr.rel (0) target = $region5
    $region4: #{tpu_custom_call.1} parent=1 // pred_region
      _
    $region5: #{tpu_custom_call.1} parent=1 // pred_fallthru
      _
    // Predicated region
    $region6: #{tpu_custom_call.1} parent=1 // pred_check
      _
    $region7: #{tpu_custom_call.1} parent=1 // pred_check_branch
      %11 = sbr.rel (0) target = $region9
    $region8: #{tpu_custom_call.1} parent=1 // pred_region
      _
    $region9: #{tpu_custom_call.1} parent=1 // pred_fallthru
      _
    %v12 = vld [vmem:[%s0] sm:$0xff]
    %vm13 = vcmask 261120
    %v14 = vsel %vm13, %v12, -inf
    %15 = vmax.xlane.f32.xlu0 %v14
    %v16 = vpop.xlane.xlu0 %15
    %v17 = vmul.f32 %v16, 1.5
    %v18 = vmul.f32 %v12, 1.5
    %v19 = vsub.f32 %v18, %v17
    %v20 = vmul.f32 %v19, 1.442695
    %v21 = vpow.pop %v20
    %v22 = vsel %vm13, %v21, 0.0
    %23 = vadd.xlane.f32.xlu0 %v22
    %v24 = vpop.xlane.xlu0 %23
    %v25 = vlog2.pop %v24
    %v26 = vmul.f32 %v25, 0.6931472
    %v27 = vadd.f32 %v17, %v26
    %v28 = vlaneseq
    %v29 = vand.u32 %v28, 127
    %v30 = vld [vmem:[%s1] sm:$0xff]
    %31 = vset.pattern.permute.xlu0 0
    %32 = vperm.xlu0 %31, %v30
    %v33 = vpop.permute.xlu0 %32
    %vm34 = vcmp.eq.s32.totalorder %v29, %v33
    %v35 = vsel %vm34, %v12, 0.0
    %v36 = vsel %vm13, %v35, 0.0
    %37 = vadd.xlane.f32.xlu0 %v36
    %v38 = vpop.xlane.xlu0 %37
    %v39 = vmul.f32 %v38, 1.5
    %v40 = vsub.f32 %v27, %v39
    %s41 = smul.u32 0, 8
    %v42 = vlaneseq
    %v43 = vshrl.u32 %v42, 7
    %v44 = vstv %s41
    %v45 = vadd.s32 %v44, %v43
    %vm46 = vcmp.lt.s32.totalorder %v45, 8
    %v47 = vsel %vm46, %v40, 0.0
    %vm48 = vcmask 7168
    %v49 = vsel %vm48, %v47, 0.0
    %50 = vadd.xlane.f32.xlu0 %v49
    %v51 = vpop.xlane.xlu0 %50
    %v52 = vrot.slane %v51, 4
    %v53 = vadd.f32 %v51, %v52
    %v54 = vrot.slane %v53, 2
    %v55 = vadd.f32 %v53, %v54
    %v56 = vrot.slane %v55, 1
    %v57 = vadd.f32 %v55, %v56
    %s58 = vtos %v57
    %v59 = vstv %s58
    %60 = vst [vmem:[#allocation2] sm:$0x1] %v59
    // Predicated region
    $region10: #{tpu_custom_call.1} parent=1 // pred_check
      _
    $region11: #{tpu_custom_call.1} parent=1 // pred_check_branch
      %62 = sbr.rel (0) target = $region13
    $region12: #{tpu_custom_call.1} parent=1 // pred_region
      %s64 = ssub.s32 16, 16
      %65 = vsyncadd [#allocation3], %s64
      %s67 = sshll.u32 [#allocation2], 4
      %s68 = int_to_ptr.vmem [resolvable:$true] %s67
      %70 = dma.vmem_to_hbm [thread:$0]  %s68, 16, %s2, [#allocation3]
    $region13: #{tpu_custom_call.1} parent=1 // pred_fallthru
      _
    // Predicated region
    $region14: #{tpu_custom_call.1} parent=1 // pred_check
      _
    $region15: #{tpu_custom_call.1} parent=1 // pred_check_branch
      %72 = sbr.rel (0) target = $region17
    $region16: #{tpu_custom_call.1} parent=1 // pred_region
      %73 = dma.done [#allocation3], 16
    $region17: #{tpu_custom_call.1} parent=1 // pred_fallthru
      _
    %74 = vsyncpa [#allocation3], 1

</llo_original>
